<compile_context>
chip_gen: v7x
topology: tpu7x:2x2x1
jax: 0.10.0
libtpu: 0.0.40
codegen_flags: <defaults>
</compile_context>

<pallas_src>
import jax
import jax.numpy as jnp
from jax.experimental import pallas as pl
from jax.experimental.pallas import tpu as pltpu


def _gcn_block_kernel(x_ref, a_ref, w_ref, b_ref, o_ref):
    # x_ref : (1, N, T*F_in)        one batch element, all T graphs lane-packed
    # a_ref : (N, N)                row-normalized adjacency (mean aggregation)
    # w_ref : (2*T*F_in, T*F_out)   rows [0:T*F_in)    = kron(I_T, W_self+W_skip)
    #                               rows [T*F_in:...)  = kron(I_T, W_neigh)
    # b_ref : (1, T*F_out)          bias tiled over T
    # o_ref : (1, N, T*F_out)       lane-dense output slab
    x = x_ref[0]                                     # (N, T*F_in)
    a = a_ref[...]                                   # (N, N)
    tf_in = x.shape[-1]

    # Mean-neighbor aggregation for all T per-timestep graphs in ONE MXU call.
    agg = jnp.dot(a, x, preferred_element_type=jnp.float32)          # (N, T*F_in)

    # Fused self(+skip) and neighbor transforms; output is lane-dense.
    h = jnp.dot(x, w_ref[:tf_in, :], preferred_element_type=jnp.float32)
    h = h + jnp.dot(agg, w_ref[tf_in:, :], preferred_element_type=jnp.float32)
    h = h + b_ref[...]                               # broadcast (1, T*F_out)

    o_ref[0] = jnp.maximum(h, 0.0)                   # ReLU


@jax.jit
def gcn_block_forward(X, A_norm, W_self, W_neigh, W_skip, bias):
    """X: (B, N, T, F_in) -> (B, N, T, F_out), matching GCNBlock.forward."""
    B, N, T, F_in = X.shape
    F_out = W_self.shape[1]

    # Fold the skip connection into the self weight, then lift both transforms
    # to act on the lane-packed (N, T*F_in) layout via kron(I_T, W).
    eye_t = jnp.eye(T, dtype=W_self.dtype)
    w_big = jnp.concatenate(
        [jnp.kron(eye_t, W_self + W_skip),            # (T*F_in, T*F_out)
         jnp.kron(eye_t, W_neigh)], axis=0)           # -> (2*T*F_in, T*F_out)
    b_big = jnp.tile(bias, (1, T))                    # (1, T*F_out)

    # Free row-major trailing-dim merge (no transpose, no extra HBM pass).
    x2 = X.reshape(B, N, T * F_in)

    flops = 2 * B * (N * N * T * F_in + N * (2 * T * F_in) * (T * F_out))
    bytes_accessed = 4 * (x2.size + B * N * T * F_out
                          + A_norm.size + w_big.size + b_big.size)

    out2 = pl.pallas_call(
        _gcn_block_kernel,
        out_shape=jax.ShapeDtypeStruct((B, N, T * F_out), jnp.float32),
        grid_spec=pltpu.PrefetchScalarGridSpec(
            num_scalar_prefetch=0,
            grid=(B,),                                     # 2 parallel steps
            in_specs=[
                pl.BlockSpec((1, N, T * F_in), lambda b: (b, 0, 0)),   # X slab
                pl.BlockSpec((N, N), lambda b: (0, 0)),                # A_norm
                pl.BlockSpec((2 * T * F_in, T * F_out), lambda b: (0, 0)),  # W
                pl.BlockSpec((1, T * F_out), lambda b: (0, 0)),        # bias
            ],
            out_specs=pl.BlockSpec((1, N, T * F_out), lambda b: (b, 0, 0)),
        ),
        compiler_params=pltpu.CompilerParams(
            dimension_semantics=("parallel",)),
        cost_estimate=pl.CostEstimate(
            flops=flops, transcendentals=0, bytes_accessed=bytes_accessed),
    )(x2, A_norm, w_big, b_big)

    # Free trailing-dim split back to the module's (B, N, T, F_out) layout.
    return out2.reshape(B, N, T, F_out)


def _reference(X, A_norm, W_self, W_neigh, W_skip, bias):
    """Pure-JAX reference mirroring the PyTorch module exactly."""
    B, N, T, F_in = X.shape
    t1 = jnp.transpose(X, (0, 2, 1, 3)).reshape(B * T, N, F_in)
    agg = jnp.einsum('nm,bmf->bnf', A_norm, t1)
    h = (jnp.einsum('bnf,fo->bno', t1, W_self)
         + jnp.einsum('bnf,fo->bno', agg, W_neigh)
         + jnp.einsum('bnf,fo->bno', t1, W_skip)
         + bias[None])
    t2 = jnp.maximum(h, 0.0)
    return jnp.transpose(t2.reshape(B, T, N, -1), (0, 2, 1, 3))


if __name__ == "__main__":
    # (batch, num_nodes, num_timesteps, in_channels); spatial_channels = F_out.
    B, N, T, F_in = 2, 16, 8, 4
    F_out = 32

    key = jax.random.PRNGKey(0)
    kx, kws, kwn, kwk, kb = jax.random.split(key, 5)

    X = jax.random.normal(kx, (B, N, T, F_in), dtype=jnp.float32)

    # Deterministic graph `g`: ring graph with self-loops, row-normalized.
    idx = jnp.arange(N)
    A = (jnp.eye(N)
         + jnp.eye(N)[(idx + 1) % N]
         + jnp.eye(N)[(idx - 1) % N]).astype(jnp.float32)
    A_norm = A / jnp.sum(A, axis=1, keepdims=True)

    scale = 1.0 / jnp.sqrt(jnp.float32(F_in))
    W_self = jax.random.uniform(kws, (F_in, F_out), jnp.float32, -scale, scale)
    W_neigh = jax.random.uniform(kwn, (F_in, F_out), jnp.float32, -scale, scale)
    W_skip = jax.random.uniform(kwk, (F_in, F_out), jnp.float32, -scale, scale)
    bias = jax.random.uniform(kb, (1, F_out), jnp.float32, -scale, scale)

    out = gcn_block_forward(X, A_norm, W_self, W_neigh, W_skip, bias)
    out = jax.block_until_ready(out)

    ref = _reference(X, A_norm, W_self, W_neigh, W_skip, bias)
    assert out.shape == (B, N, T, F_out), out.shape
    assert jnp.allclose(out, ref, atol=1e-5, rtol=1e-5), "mismatch vs reference"

    print("KERNEL_OK")
</pallas_src>

<mosaic_0001>
module attributes {stable_mosaic.version = 11 : i64} {
  func.func @_gcn_block_kernel(%arg0: i32, %arg1: memref<1x16x32xf32, #tpu.memory_space<vmem>>, %arg2: memref<16x16xf32, #tpu.memory_space<vmem>>, %arg3: memref<64x256xf32, #tpu.memory_space<vmem>>, %arg4: memref<1x256xf32, #tpu.memory_space<vmem>>, %arg5: memref<1x16x256xf32, #tpu.memory_space<vmem>>) attributes {dimension_semantics = [#tpu.dimension_semantics<parallel>], iteration_bounds = array<i64: 2>, scalar_prefetch = 0 : i64, scratch_operands = 0 : i64, tpu.core_type = #tpu.core_type<tc>, window_params = [{transform_indices = @transform_0, window_bounds = array<i64: 1, 16, 32>}, {pipeline_mode = #tpu.pipeline_mode<synchronous>, transform_indices = @transform_1, window_bounds = array<i64: 16, 16>}, {pipeline_mode = #tpu.pipeline_mode<synchronous>, transform_indices = @transform_2, window_bounds = array<i64: 64, 256>}, {pipeline_mode = #tpu.pipeline_mode<synchronous>, transform_indices = @transform_3, window_bounds = array<i64: 1, 256>}, {transform_indices = @transform_4, window_bounds = array<i64: 1, 16, 256>}]} {
    %c0 = arith.constant 0 : index
    %c0_0 = arith.constant 0 : index
    %c0_1 = arith.constant 0 : index
    %0 = vector.load %arg1[%c0, %c0_0, %c0_1] : memref<1x16x32xf32, #tpu.memory_space<vmem>>, vector<1x16x32xf32>
    %1 = vector.shape_cast %0 : vector<1x16x32xf32> to vector<16x32xf32>
    %c0_2 = arith.constant 0 : index
    %c0_3 = arith.constant 0 : index
    %2 = vector.load %arg2[%c0_2, %c0_3] : memref<16x16xf32, #tpu.memory_space<vmem>>, vector<16x16xf32>
    %cst = arith.constant dense<0.000000e+00> : vector<16x32xf32>
    %3 = tpu.matmul %2, %1, %cst {dimension_numbers = #tpu.dot_dimension_numbers<[1], [0], [0], [1], [0, 0, 1, 1], [], []>} : vector<16x16xf32>, vector<16x32xf32>, vector<16x32xf32> -> vector<16x32xf32>
    %c0_4 = arith.constant 0 : index
    %c0_5 = arith.constant 0 : index
    %4 = vector.load %arg3[%c0_4, %c0_5] : memref<64x256xf32, #tpu.memory_space<vmem>>, vector<32x256xf32>
    %cst_6 = arith.constant dense<0.000000e+00> : vector<16x256xf32>
    %5 = tpu.matmul %1, %4, %cst_6 {dimension_numbers = #tpu.dot_dimension_numbers<[1], [0], [0], [1], [0, 0, 1, 1], [], []>} : vector<16x32xf32>, vector<32x256xf32>, vector<16x256xf32> -> vector<16x256xf32>
    %c32 = arith.constant 32 : index
    %c0_7 = arith.constant 0 : index
    %6 = vector.load %arg3[%c32, %c0_7] : memref<64x256xf32, #tpu.memory_space<vmem>>, vector<32x256xf32>
    %cst_8 = arith.constant dense<0.000000e+00> : vector<16x256xf32>
    %7 = tpu.matmul %3, %6, %cst_8 {dimension_numbers = #tpu.dot_dimension_numbers<[1], [0], [0], [1], [0, 0, 1, 1], [], []>} : vector<16x32xf32>, vector<32x256xf32>, vector<16x256xf32> -> vector<16x256xf32>
    %8 = arith.addf %5, %7 : vector<16x256xf32>
    %c0_9 = arith.constant 0 : index
    %c0_10 = arith.constant 0 : index
    %9 = vector.load %arg4[%c0_9, %c0_10] : memref<1x256xf32, #tpu.memory_space<vmem>>, vector<1x256xf32>
    %10 = vector.broadcast %9 : vector<1x256xf32> to vector<16x256xf32>
    %11 = arith.addf %8, %10 : vector<16x256xf32>
    %cst_11 = arith.constant 0.000000e+00 : f32
    %12 = vector.broadcast %cst_11 : f32 to vector<16x256xf32>
    %13 = arith.maximumf %11, %12 : vector<16x256xf32>
    %c0_12 = arith.constant 0 : index
    %c0_13 = arith.constant 0 : index
    %c0_14 = arith.constant 0 : index
    %14 = vector.load %arg5[%c0_12, %c0_13, %c0_14] : memref<1x16x256xf32, #tpu.memory_space<vmem>>, vector<1x16x256xf32>
    %15 = vector.shape_cast %14 : vector<1x16x256xf32> to vector<16x256xf32>
    %16 = vector.shape_cast %13 : vector<16x256xf32> to vector<1x16x256xf32>
    tpu.vector_store %arg5[%c0_12, %c0_13, %c0_14], %16 {strides = array<i32>} : memref<1x16x256xf32, #tpu.memory_space<vmem>>, vector<1x16x256xf32>,
    return
  }
  func.func @transform_0(%arg0: i32) -> (i32, i32, i32) {
    %c0_i32 = arith.constant 0 : i32
    %c0_i32_0 = arith.constant 0 : i32
    %c0_i32_1 = arith.constant 0 : i32
    return %arg0, %c0_i32, %c0_i32_0 : i32, i32, i32
  }
  func.func @transform_1(%arg0: i32) -> (i32, i32) {
    %c0_i32 = arith.constant 0 : i32
    %c0_i32_0 = arith.constant 0 : i32
    %c0_i32_1 = arith.constant 0 : i32
    return %c0_i32, %c0_i32_0 : i32, i32
  }
  func.func @transform_2(%arg0: i32) -> (i32, i32) {
    %c0_i32 = arith.constant 0 : i32
    %c0_i32_0 = arith.constant 0 : i32
    %c0_i32_1 = arith.constant 0 : i32
    return %c0_i32, %c0_i32_0 : i32, i32
  }
  func.func @transform_3(%arg0: i32) -> (i32, i32) {
    %c0_i32 = arith.constant 0 : i32
    %c0_i32_0 = arith.constant 0 : i32
    %c0_i32_1 = arith.constant 0 : i32
    return %c0_i32, %c0_i32_0 : i32, i32
  }
  func.func @transform_4(%arg0: i32) -> (i32, i32, i32) {
    %c0_i32 = arith.constant 0 : i32
    %c0_i32_0 = arith.constant 0 : i32
    %c0_i32_1 = arith.constant 0 : i32
    return %arg0, %c0_i32, %c0_i32_0 : i32, i32, i32
  }
}

</mosaic_0001>

<llo_original>
// kernel: gcn_block_forward.1
$region0: #{gcn_block_forward.1}
  #allocation0 [shape = 'u32[]', space=smem, size = 0x4, offset = 0x4, fixed_abs, tag = 'smem constant byte address 0x4 - core index']
  #allocation1 [shape = 'u32[144,128]{1,0:T(1,128)}', space=vmem, size = 0x12000, scoped, tag = 'internal scratch']
  %s0 = inlined_call_operand.vmem [shape: f32[2,16,32], index: 0, kind: input, shape index: {}]
  %s1 = inlined_call_operand.vmem [shape: f32[16,16], index: 1, kind: input, shape index: {}]
  %s2 = inlined_call_operand.vmem [shape: f32[64,256], index: 2, kind: input, shape index: {}]
  %s3 = inlined_call_operand.vmem [shape: f32[1,256], index: 3, kind: input, shape index: {}]
  %s4 = inlined_call_operand.vmem [shape: f32[2,16,256], index: 4, kind: output, shape index: {}]
  %s5 = sld [smem:[#allocation0]]
  $region49: #{gcn_block_forward.1} parent=0
    _
  %s7 = ssub.s32 1, %s5
  %s8 = scalar_select 0, %s7, %s5
  loop: start=0, step=1, limit=4
  $region2: #{gcn_block_forward.1} parent=0 // loop_pre_header
    _
  $region3: #{gcn_block_forward.1} parent=0 // loop_header
    %s10 = sphi 0, %s14
    %p11 = scmp.ge.s32.totalorder %s10, 4
    %s20 = sphi 0, %s22
    %s23 = sphi 0, %s20
    %s24 = sphi 0, %s23
    %s40 = sphi 0, %s24
    %s44 = sphi 0, %s44
    %s46 = sphi 0, %s44
    %s47 = sphi 0, %s46
    %s61 = sphi 0, %s47
    %s65 = sphi 0, %s65
    %s67 = sphi 0, %s65
    %s68 = sphi 0, %s67
    %s82 = sphi 0, %s68
    %s86 = sphi 0, %s86
    %s88 = sphi 0, %s86
    %s89 = sphi 0, %s88
    %s103 = sphi 0, %s89
    %s109 = sphi 0, %s111
    %s112 = sphi 0, %s109
    %s113 = sphi 0, %s112
    %s129 = sphi 0, %s113
  $region4: #{gcn_block_forward.1} parent=0 // loop_header_branch
    %13 = sbr.rel (%p11) target = $region8
  $region5: #{gcn_block_forward.1} parent=0 // loop_body
    %s15 = ssub.s32 %s10, 1
    %s16 = ssub.s32 %s10, 2
    %s17 = sadd.s32 %s10, 1
    %s18 = ssub.s32 %s10, %s17
    %p19 = scmp.eq.s32.totalorder %s18, 0
    %s21 = sadd.s32 %s20, 1
    %s22 = scalar_select %p19, %s20, %s21
    %p25 = pneg %p19
    %p26 = scmp.eq.s32.totalorder %s10, 1
    %p27 = por %p25, %p26
    %p28 = scmp.ne.s32.totalorder %s20, %s23
    %p29 = scmp.eq.s32.totalorder %s10, 0
    %p30 = por %p28, %p29
    %p31 = scmp.ne.s32.totalorder %s20, %s23
    %p32 = scmp.eq.s32.totalorder %s15, 1
    %p33 = por %p31, %p32
    %p34 = scmp.ne.s32.totalorder %s23, %s24
    %p35 = scmp.eq.s32.totalorder %s15, 0
    %p36 = por %p34, %p35
    %p37 = scmp.ne.s32.totalorder %s23, %s24
    %p38 = scmp.eq.s32.totalorder %s16, 1
    %p39 = por %p37, %p38
    %p41 = scmp.ne.s32.totalorder %s24, %s40
    %p42 = scmp.eq.s32.totalorder %s16, 0
    %p43 = por %p41, %p42
    %s45 = sadd.s32 %s44, 1
    %p48 = scmp.eq.s32.totalorder %s10, 1
    %p49 = scmp.ne.s32.totalorder %s44, %s46
    %p50 = scmp.eq.s32.totalorder %s10, 0
    %p51 = por %p49, %p50
    %p52 = scmp.ne.s32.totalorder %s44, %s46
    %p53 = scmp.eq.s32.totalorder %s15, 1
    %p54 = por %p52, %p53
    %p55 = scmp.ne.s32.totalorder %s46, %s47
    %p56 = scmp.eq.s32.totalorder %s15, 0
    %p57 = por %p55, %p56
    %p58 = scmp.ne.s32.totalorder %s46, %s47
    %p59 = scmp.eq.s32.totalorder %s16, 1
    %p60 = por %p58, %p59
    %p62 = scmp.ne.s32.totalorder %s47, %s61
    %p63 = scmp.eq.s32.totalorder %s16, 0
    %p64 = por %p62, %p63
    %s66 = sadd.s32 %s65, 1
    %p69 = scmp.eq.s32.totalorder %s10, 1
    %p70 = scmp.ne.s32.totalorder %s65, %s67
    %p71 = scmp.eq.s32.totalorder %s10, 0
    %p72 = por %p70, %p71
    %p73 = scmp.ne.s32.totalorder %s65, %s67
    %p74 = scmp.eq.s32.totalorder %s15, 1
    %p75 = por %p73, %p74
    %p76 = scmp.ne.s32.totalorder %s67, %s68
    %p77 = scmp.eq.s32.totalorder %s15, 0
    %p78 = por %p76, %p77
    %p79 = scmp.ne.s32.totalorder %s67, %s68
    %p80 = scmp.eq.s32.totalorder %s16, 1
    %p81 = por %p79, %p80
    %p83 = scmp.ne.s32.totalorder %s68, %s82
    %p84 = scmp.eq.s32.totalorder %s16, 0
    %p85 = por %p83, %p84
    %s87 = sadd.s32 %s86, 1
    %p90 = scmp.eq.s32.totalorder %s10, 1
    %p91 = scmp.ne.s32.totalorder %s86, %s88
    %p92 = scmp.eq.s32.totalorder %s10, 0
    %p93 = por %p91, %p92
    %p94 = scmp.ne.s32.totalorder %s86, %s88
    %p95 = scmp.eq.s32.totalorder %s15, 1
    %p96 = por %p94, %p95
    %p97 = scmp.ne.s32.totalorder %s88, %s89
    %p98 = scmp.eq.s32.totalorder %s15, 0
    %p99 = por %p97, %p98
    %p100 = scmp.ne.s32.totalorder %s88, %s89
    %p101 = scmp.eq.s32.totalorder %s16, 1
    %p102 = por %p100, %p101
    %p104 = scmp.ne.s32.totalorder %s89, %s103
    %p105 = scmp.eq.s32.totalorder %s16, 0
    %p106 = por %p104, %p105
    %s107 = ssub.s32 %s10, %s17
    %p108 = scmp.eq.s32.totalorder %s107, 0
    %s110 = sadd.s32 %s109, 1
    %s111 = scalar_select %p108, %s109, %s110
    %p114 = pneg %p108
    %p115 = scmp.eq.s32.totalorder %s10, 1
    %p116 = por %p114, %p115
    %p117 = scmp.ne.s32.totalorder %s109, %s112
    %p118 = scmp.eq.s32.totalorder %s10, 0
    %p119 = por %p117, %p118
    %p120 = scmp.ne.s32.totalorder %s109, %s112
    %p121 = scmp.eq.s32.totalorder %s15, 1
    %p122 = por %p120, %p121
    %p123 = scmp.ne.s32.totalorder %s112, %s113
    %p124 = scmp.eq.s32.totalorder %s15, 0
    %p125 = por %p123, %p124
    %p126 = scmp.ne.s32.totalorder %s112, %s113
    %p127 = scmp.eq.s32.totalorder %s16, 1
    %p128 = por %p126, %p127
    %p130 = scmp.ne.s32.totalorder %s113, %s129
    %p131 = scmp.eq.s32.totalorder %s16, 0
    %p132 = por %p130, %p131
    %p133 = scmp.le.s32.totalorder 1, %s10
    %p134 = scmp.lt.s32.totalorder %s10, 3
    %p135 = pnand %p133, %p134
    %p136 = pneg %p135
    // Predicated region
    $region9: #{gcn_block_forward.1} parent=5 // pred_check
      _
    $region10: #{gcn_block_forward.1} parent=5 // pred_check_branch
      %138 = sbr.rel (%p135) target = $region12
    $region11: #{gcn_block_forward.1} parent=5 // pred_region
      %s139 = ssub.s32 %s10, 1
      // Predicated region
      $region13: #{gcn_block_forward.1} parent=11 // pred_check
        %p140 = pneg %p57
      $region14: #{gcn_block_forward.1} parent=11 // pred_check_branch
        %142 = sbr.rel (%p140) target = $region16
      $region15: #{gcn_block_forward.1} parent=11 // pred_region
        _
      $region16: #{gcn_block_forward.1} parent=11 // pred_fallthru
        _
      // Predicated region
      $region17: #{gcn_block_forward.1} parent=11 // pred_check
        %p143 = pneg %p78
      $region18: #{gcn_block_forward.1} parent=11 // pred_check_branch
        %145 = sbr.rel (%p143) target = $region20
      $region19: #{gcn_block_forward.1} parent=11 // pred_region
        _
      $region20: #{gcn_block_forward.1} parent=11 // pred_fallthru
        _
      // Predicated region
      $region21: #{gcn_block_forward.1} parent=11 // pred_check
        %p146 = pneg %p99
      $region22: #{gcn_block_forward.1} parent=11 // pred_check_branch
        %148 = sbr.rel (%p146) target = $region24
      $region23: #{gcn_block_forward.1} parent=11 // pred_region
        _
      $region24: #{gcn_block_forward.1} parent=11 // pred_fallthru
        _
    $region12: #{gcn_block_forward.1} parent=5 // pred_fallthru
      _
    %p149 = scmp.lt.s32.totalorder %s10, 2
    // Predicated region
    $region25: #{gcn_block_forward.1} parent=5 // pred_check
      %p150 = pneg %p149
    $region26: #{gcn_block_forward.1} parent=5 // pred_check_branch
      %152 = sbr.rel (%p150) target = $region28
    $region27: #{gcn_block_forward.1} parent=5 // pred_region
      // Predicated region
      $region29: #{gcn_block_forward.1} parent=27 // pred_check
        %p153 = pneg %p30
      $region30: #{gcn_block_forward.1} parent=27 // pred_check_branch
        %155 = sbr.rel (%p153) target = $region32
      $region31: #{gcn_block_forward.1} parent=27 // pred_region
        %p156 = scmp.lt.s32.totalorder %s10, 1
        %s157 = scalar_select %p156, %s10, 1
        %s158 = smul.addr %s157, 2
        %s159 = smul.addr %s158, 8
        %s160 = scalar_lea.vmem %s0, %s159
      $region32: #{gcn_block_forward.1} parent=27 // pred_fallthru
        _
    $region28: #{gcn_block_forward.1} parent=5 // pred_fallthru
      _
    %p161 = scmp.le.s32.totalorder 1, %s10
    %p162 = scmp.lt.s32.totalorder %s10, 3
    %p163 = pnand %p161, %p162
    %p164 = pneg %p163
    // Predicated region
    $region33: #{gcn_block_forward.1} parent=5 // pred_check
      _
    $region34: #{gcn_block_forward.1} parent=5 // pred_check_branch
      %166 = sbr.rel (%p163) target = $region36
    $region35: #{gcn_block_forward.1} parent=5 // pred_region
      %s167 = ssub.s32 %s10, 1
      %p168 = scmp.lt.s32.totalorder %s15, 1
      %s169 = scalar_select %p168, %s15, 1
      %s170 = smul.addr %s169, 2
      %s171 = smul.addr %s170, 8
      %s172 = scalar_lea.vmem %s0, %s171
      %p173 = pneg %p36
      %p174 = pneg %p33
      %p175 = pneg %p57
      %p176 = pneg %p54
      %p177 = pneg %p78
      %p178 = pneg %p75
      %p179 = pneg %p99
      %p180 = pneg %p96
      %p181 = pneg %p125
      %p182 = pneg %p122
      %p183 = scmp.lt.s32.totalorder %s15, 1
      %s184 = scalar_select %p183, %s15, 1
      %s185 = smul.addr %s184, 4
      %s186 = smul.addr %s185, 8
      %s187 = scalar_lea.vmem %s4, %s186
      %p188 = scmp.lt.s32.totalorder %s15, 1
      %s189 = scalar_select %p188, %s15, 1
      %s190 = smul.addr %s189, 2
      %s191 = smul.addr %s190, 8
      %s192 = scalar_lea.vmem %s0, %s191
      %p193 = scmp.lt.s32.totalorder %s15, 1
      %s194 = scalar_select %p193, %s15, 1
      %s195 = smul.addr %s194, 4
      %s196 = smul.addr %s195, 8
      %s197 = scalar_lea.vmem %s4, %s196
      %v198 = vld [vmem:[%s192] sm:$0xff]
      %v199 = vld [vmem:[%s192 + $0x8] sm:$0xff]
      %v200 = vld [vmem:[%s1] sm:$0xff]
      %v201 = vld [vmem:[%s1 + $0x8] sm:$0xff]
      %vm202 = vcmask 130048
      %v204 = vsel %vm202, %v200, 0
      %v207 = vsel %vm202, %v201, 0
      %209 = vmatprep.subr.mxu0 0.0
      %210 = vmatpush1.msra.mxu0 %v198
      %211 = vmatprep.subr.mxu0 0.0
      %212 = vmatpush1.msra.mxu0 %v199
      %213 = vmatprep.subr.mxu0 0.0
      %214 = vmatpush1.msra.mxu0 0.0
      %215 = vmatprep.subr.mxu0 0.0
      %216 = vmatpush1.msra.mxu0 0.0
      %217 = vmatprep.subr.mxu0 0.0
      %218 = vmatpush1.msra.mxu0 0.0
      %219 = vmatprep.subr.mxu0 0.0
      %220 = vmatpush1.msra.mxu0 0.0
      %221 = vmatprep.subr.mxu0 0.0
      %222 = vmatpush1.msra.mxu0 0.0
      %223 = vmatprep.subr.mxu0 0.0
      %224 = vmatpush1.msra.mxu0 0.0
      %225 = vmatprep.subr.mxu0 0.0
      %226 = vmatpush1.msra.mxu0 0.0
      %227 = vmatprep.subr.mxu0 0.0
      %228 = vmatpush1.msra.mxu0 0.0
      %229 = vmatprep.subr.mxu0 0.0
      %230 = vmatpush1.msra.mxu0 0.0
      %231 = vmatprep.subr.mxu0 0.0
      %232 = vmatpush1.msra.mxu0 0.0
      %233 = vmatprep.subr.mxu0 0.0
      %234 = vmatpush1.msra.mxu0 0.0
      %235 = vmatprep.subr.mxu0 0.0
      %236 = vmatpush1.msra.mxu0 0.0
      %237 = vmatprep.subr.mxu0 0.0
      %238 = vmatpush1.msra.mxu0 0.0
      %239 = vmatprep.subr.mxu0 0.0
      %240 = vmatpush1.msra.mxu0 0.0
      %241 = vmatprep.subr.mxu0 0.0
      %242 = vmatpush1.msra.mxu0 0.0
      %243 = vmatprep.subr.mxu0 0.0
      %244 = vmatpush1.msra.mxu0 0.0
      %245 = vmatprep.subr.mxu0 0.0
      %246 = vmatpush1.msra.mxu0 0.0
      %247 = vmatprep.subr.mxu0 0.0
      %248 = vmatpush1.msra.mxu0 0.0
      %249 = vmatprep.subr.mxu0 0.0
      %250 = vmatpush1.msra.mxu0 0.0
      %251 = vmatprep.subr.mxu0 0.0
      %252 = vmatpush1.msra.mxu0 0.0
      %253 = vmatprep.subr.mxu0 0.0
      %254 = vmatpush1.msra.mxu0 0.0
      %255 = vmatprep.subr.mxu0 0.0
      %256 = vmatpush1.msra.mxu0 0.0
      %257 = vmatprep.subr.mxu0 0.0
      %258 = vmatpush1.msra.mxu0 0.0
      %259 = vmatprep.subr.mxu0 0.0
      %260 = vmatpush1.msra.mxu0 0.0
      %261 = vmatprep.subr.mxu0 0.0
      %262 = vmatpush1.msra.mxu0 0.0
      %263 = vmatprep.subr.mxu0 0.0
      %264 = vmatpush1.msra.mxu0 0.0
      %265 = vmatprep.subr.mxu0 0.0
      %266 = vmatpush1.msra.mxu0 0.0
      %267 = vmatprep.subr.mxu0 0.0
      %268 = vmatpush1.msra.mxu0 0.0
      %269 = vmatprep.subr.mxu0 0.0
      %270 = vmatpush1.msra.mxu0 0.0
      %271 = vmatprep.subr.mxu0 0.0
      %272 = vmatpush1.msra.mxu0 0.0
      %273 = vmatprep.mubr.f32.mxu0 0.0
      %274 = vmatmul.mubr.f32.gmra.mrb[0].mxu0 %v204
      %v275 = vpop.f32.mrb[0].mxu0
      %v276 = vadd.f32 0.0, %v275
      %v277 = vpop.f32.mrb[0].mxu0
      %278 = vmatprep.mubr.f32.mxu0 0.0
      %279 = vmatmul.mubr.f32.gmra.mrb[0].mxu0 %v207
      %v280 = vpop.f32.mrb[0].mxu0
      %v281 = vadd.f32 0.0, %v280
      %v282 = vpop.f32.mrb[0].mxu0
      %283 = vdwg.mxu0
      %v284 = vld [vmem:[%s2] sm:$0xff]
      %v285 = vld [vmem:[%s2 + $0x8] sm:$0xff]
      %v286 = vld [vmem:[%s2 + $0x10] sm:$0xff]
      %v287 = vld [vmem:[%s2 + $0x18] sm:$0xff]
      %v288 = vld [vmem:[%s2 + $0x20] sm:$0xff]
      %v289 = vld [vmem:[%s2 + $0x28] sm:$0xff]
      %v290 = vld [vmem:[%s2 + $0x30] sm:$0xff]
      %v291 = vld [vmem:[%s2 + $0x38] sm:$0xff]
      %v292 = vld [vmem:[%s2 + $0x40] sm:$0xff]
      %v293 = vld [vmem:[%s2 + $0x48] sm:$0xff]
      %v294 = vld [vmem:[%s2 + $0x50] sm:$0xff]
      %v295 = vld [vmem:[%s2 + $0x58] sm:$0xff]
      %v296 = vld [vmem:[%s2 + $0x60] sm:$0xff]
      %v297 = vld [vmem:[%s2 + $0x68] sm:$0xff]
      %v298 = vld [vmem:[%s2 + $0x70] sm:$0xff]
      %v299 = vld [vmem:[%s2 + $0x78] sm:$0xff]
      %vm300 = vcmask 261120
      %v302 = vsel %vm300, %v276, 0
      %v305 = vsel %vm300, %v281, 0
      %307 = vmatprep.subr.mxu0 %v293
      %308 = vmatpush1.msra.mxu0 %v292
      %309 = vmatprep.subr.mxu0 %v295
      %310 = vmatpush1.msra.mxu0 %v294
      %311 = vmatprep.subr.mxu0 %v297
      %312 = vmatpush1.msra.mxu0 %v296
      %313 = vmatprep.subr.mxu0 %v299
      %314 = vmatpush1.msra.mxu0 %v298
      %315 = vmatprep.subr.mxu0 0.0
      %316 = vmatpush1.msra.mxu0 0.0
      %317 = vmatprep.subr.mxu0 0.0
      %318 = vmatpush1.msra.mxu0 0.0
      %319 = vmatprep.subr.mxu0 0.0
      %320 = vmatpush1.msra.mxu0 0.0
      %321 = vmatprep.subr.mxu0 0.0
      %322 = vmatpush1.msra.mxu0 0.0
      %323 = vmatprep.subr.mxu0 0.0
      %324 = vmatpush1.msra.mxu0 0.0
      %325 = vmatprep.subr.mxu0 0.0
      %326 = vmatpush1.msra.mxu0 0.0
      %327 = vmatprep.subr.mxu0 0.0
      %328 = vmatpush1.msra.mxu0 0.0
      %329 = vmatprep.subr.mxu0 0.0
      %330 = vmatpush1.msra.mxu0 0.0
      %331 = vmatprep.subr.mxu0 0.0
      %332 = vmatpush1.msra.mxu0 0.0
      %333 = vmatprep.subr.mxu0 0.0
      %334 = vmatpush1.msra.mxu0 0.0
      %335 = vmatprep.subr.mxu0 0.0
      %336 = vmatpush1.msra.mxu0 0.0
      %337 = vmatprep.subr.mxu0 0.0
      %338 = vmatpush1.msra.mxu0 0.0
      %339 = vmatprep.subr.mxu0 0.0
      %340 = vmatpush1.msra.mxu0 0.0
      %341 = vmatprep.subr.mxu0 0.0
      %342 = vmatpush1.msra.mxu0 0.0
      %343 = vmatprep.subr.mxu0 0.0
      %344 = vmatpush1.msra.mxu0 0.0
      %345 = vmatprep.subr.mxu0 0.0
      %346 = vmatpush1.msra.mxu0 0.0
      %347 = vmatprep.subr.mxu0 0.0
      %348 = vmatpush1.msra.mxu0 0.0
      %349 = vmatprep.subr.mxu0 0.0
      %350 = vmatpush1.msra.mxu0 0.0
      %351 = vmatprep.subr.mxu0 0.0
      %352 = vmatpush1.msra.mxu0 0.0
      %353 = vmatprep.subr.mxu0 0.0
      %354 = vmatpush1.msra.mxu0 0.0
      %355 = vmatprep.subr.mxu0 0.0
      %356 = vmatpush1.msra.mxu0 0.0
      %357 = vmatprep.subr.mxu0 0.0
      %358 = vmatpush1.msra.mxu0 0.0
      %359 = vmatprep.subr.mxu0 0.0
      %360 = vmatpush1.msra.mxu0 0.0
      %361 = vmatprep.subr.mxu0 0.0
      %362 = vmatpush1.msra.mxu0 0.0
      %363 = vmatprep.subr.mxu0 0.0
      %364 = vmatpush1.msra.mxu0 0.0
      %365 = vmatprep.subr.mxu0 0.0
      %366 = vmatpush1.msra.mxu0 0.0
      %367 = vmatprep.subr.mxu0 0.0
      %368 = vmatpush1.msra.mxu0 0.0
      %369 = vmatprep.subr.mxu0 0.0
      %370 = vmatpush1.msra.mxu0 0.0
      %371 = vmatprep.mubr.f32.mxu0 0.0
      %372 = vmatmul.mubr.f32.gmra.mrb[0].mxu0 %v302
      %v373 = vpop.f32.mrb[0].mxu0
      %v374 = vadd.f32 0.0, %v373
      %v375 = vpop.f32.mrb[0].mxu0
      %v376 = vadd.f32 0.0, %v375
      %377 = vmatprep.mubr.f32.mxu0 0.0
      %378 = vmatmul.mubr.f32.gmra.mrb[0].mxu0 %v305
      %v379 = vpop.f32.mrb[0].mxu0
      %v380 = vadd.f32 0.0, %v379
      %v381 = vpop.f32.mrb[0].mxu0
      %v382 = vadd.f32 0.0, %v381
      %383 = vdwg.mxu0
      %v385 = vsel %vm300, %v198, 0
      %v388 = vsel %vm300, %v199, 0
      %390 = vmatprep.subr.mxu0 %v285
      %391 = vmatpush1.msra.mxu0 %v284
      %392 = vmatprep.subr.mxu0 %v287
      %393 = vmatpush1.msra.mxu0 %v286
      %394 = vmatprep.subr.mxu0 %v289
      %395 = vmatpush1.msra.mxu0 %v288
      %396 = vmatprep.subr.mxu0 %v291
      %397 = vmatpush1.msra.mxu0 %v290
      %398 = vmatprep.subr.mxu0 0.0
      %399 = vmatpush1.msra.mxu0 0.0
      %400 = vmatprep.subr.mxu0 0.0
      %401 = vmatpush1.msra.mxu0 0.0
      %402 = vmatprep.subr.mxu0 0.0
      %403 = vmatpush1.msra.mxu0 0.0
      %404 = vmatprep.subr.mxu0 0.0
      %405 = vmatpush1.msra.mxu0 0.0
      %406 = vmatprep.subr.mxu0 0.0
      %407 = vmatpush1.msra.mxu0 0.0
      %408 = vmatprep.subr.mxu0 0.0
      %409 = vmatpush1.msra.mxu0 0.0
      %410 = vmatprep.subr.mxu0 0.0
      %411 = vmatpush1.msra.mxu0 0.0
      %412 = vmatprep.subr.mxu0 0.0
      %413 = vmatpush1.msra.mxu0 0.0
      %414 = vmatprep.subr.mxu0 0.0
      %415 = vmatpush1.msra.mxu0 0.0
      %416 = vmatprep.subr.mxu0 0.0
      %417 = vmatpush1.msra.mxu0 0.0
      %418 = vmatprep.subr.mxu0 0.0
      %419 = vmatpush1.msra.mxu0 0.0
      %420 = vmatprep.subr.mxu0 0.0
      %421 = vmatpush1.msra.mxu0 0.0
      %422 = vmatprep.subr.mxu0 0.0
      %423 = vmatpush1.msra.mxu0 0.0
      %424 = vmatprep.subr.mxu0 0.0
      %425 = vmatpush1.msra.mxu0 0.0
      %426 = vmatprep.subr.mxu0 0.0
      %427 = vmatpush1.msra.mxu0 0.0
      %428 = vmatprep.subr.mxu0 0.0
      %429 = vmatpush1.msra.mxu0 0.0
      %430 = vmatprep.subr.mxu0 0.0
      %431 = vmatpush1.msra.mxu0 0.0
      %432 = vmatprep.subr.mxu0 0.0
      %433 = vmatpush1.msra.mxu0 0.0
      %434 = vmatprep.subr.mxu0 0.0
      %435 = vmatpush1.msra.mxu0 0.0
      %436 = vmatprep.subr.mxu0 0.0
      %437 = vmatpush1.msra.mxu0 0.0
      %438 = vmatprep.subr.mxu0 0.0
      %439 = vmatpush1.msra.mxu0 0.0
      %440 = vmatprep.subr.mxu0 0.0
      %441 = vmatpush1.msra.mxu0 0.0
      %442 = vmatprep.subr.mxu0 0.0
      %443 = vmatpush1.msra.mxu0 0.0
      %444 = vmatprep.subr.mxu0 0.0
      %445 = vmatpush1.msra.mxu0 0.0
      %446 = vmatprep.subr.mxu0 0.0
      %447 = vmatpush1.msra.mxu0 0.0
      %448 = vmatprep.subr.mxu0 0.0
      %449 = vmatpush1.msra.mxu0 0.0
      %450 = vmatprep.subr.mxu0 0.0
      %451 = vmatpush1.msra.mxu0 0.0
      %452 = vmatprep.subr.mxu0 0.0
      %453 = vmatpush1.msra.mxu0 0.0
      %454 = vmatprep.mubr.f32.mxu0 0.0
      %455 = vmatmul.mubr.f32.gmra.mrb[0].mxu0 %v385
      %v456 = vpop.f32.mrb[0].mxu0
      %v457 = vadd.f32 %v374, %v456
      %v458 = vpop.f32.mrb[0].mxu0
      %v459 = vadd.f32 %v376, %v458
      %460 = vmatprep.mubr.f32.mxu0 0.0
      %461 = vmatmul.mubr.f32.gmra.mrb[0].mxu0 %v388
      %v462 = vpop.f32.mrb[0].mxu0
      %v463 = vadd.f32 %v380, %v462
      %v464 = vpop.f32.mrb[0].mxu0
      %v465 = vadd.f32 %v382, %v464
      %466 = vdwg.mxu0
      %v467 = vld [vmem:[%s3] sm:$0x3]
      %v469 = vlaneseq
      %v470 = vshrl.u32 %v469, 7
      %v471 = vsub.s32 0, %v470
      %v472 = vrot.slane %v467, %v471
      %v473 = vlaneseq
      %v474 = vshrl.u32 %v473, 7
      %v475 = vsub.s32 1, %v474
      %v476 = vrot.slane %v467, %v475
      %v479 = vadd.f32 %v457, %v472
      %v480 = vadd.f32 %v459, %v476
      %v481 = vadd.f32 %v463, %v472
      %v482 = vadd.f32 %v465, %v476
      %v483 = vmax.f32 %v479, 0.0
      %v484 = vmax.f32 %v480, 0.0
      %v485 = vmax.f32 %v481, 0.0
      %v486 = vmax.f32 %v482, 0.0
      %487 = vst [vmem:[%s197] sm:$0xff] %v483
      %488 = vst [vmem:[%s197 + $0x8] sm:$0xff] %v484
      %489 = vst [vmem:[%s197 + $0x10] sm:$0xff] %v485
      %490 = vst [vmem:[%s197 + $0x18] sm:$0xff] %v486
      %p491 = scmp.lt.s32.totalorder %s15, 1
      %s492 = scalar_select %p491, %s15, 1
      %s493 = smul.addr %s492, 4
      %s494 = smul.addr %s493, 8
      %s495 = scalar_lea.vmem %s4, %s494
      // Predicated region
      $region37: #{gcn_block_forward.1} parent=35 // pred_check
        %p496 = pneg %p122
      $region38: #{gcn_block_forward.1} parent=35 // pred_check_branch
        %498 = sbr.rel (%p496) target = $region40
      $region39: #{gcn_block_forward.1} parent=35 // pred_region
        _
      $region40: #{gcn_block_forward.1} parent=35 // pred_fallthru
        _
    $region36: #{gcn_block_forward.1} parent=5 // pred_fallthru
      _
    %p499 = scmp.le.s32.totalorder 2, %s10
    // Predicated region
    $region41: #{gcn_block_forward.1} parent=5 // pred_check
      %p500 = pneg %p499
    $region42: #{gcn_block_forward.1} parent=5 // pred_check_branch
      %502 = sbr.rel (%p500) target = $region44
    $region43: #{gcn_block_forward.1} parent=5 // pred_region
      %s503 = ssub.s32 %s10, 2
      // Predicated region
      $region45: #{gcn_block_forward.1} parent=43 // pred_check
        %p504 = pneg %p128
      $region46: #{gcn_block_forward.1} parent=43 // pred_check_branch
        %506 = sbr.rel (%p504) target = $region48
      $region47: #{gcn_block_forward.1} parent=43 // pred_region
        %p507 = scmp.lt.s32.totalorder %s16, 1
        %s508 = scalar_select %p507, %s16, 1
        %s509 = smul.addr %s508, 4
        %s510 = smul.addr %s509, 8
        %s511 = scalar_lea.vmem %s4, %s510
      $region48: #{gcn_block_forward.1} parent=43 // pred_fallthru
        _
    $region44: #{gcn_block_forward.1} parent=5 // pred_fallthru
      _
  $region6: #{gcn_block_forward.1} parent=0 // loop_footer
    %s14 = sadd.s32 1, %s10
  $region7: #{gcn_block_forward.1} parent=0 // loop_footer_branch
    %9 = sbr.rel target = $region3
  $region8: #{gcn_block_forward.1} parent=0 // loop_exit
    _

</llo_original>
